<compile_context>
chip_gen: v6e
topology: v6e:2x2x1
jax: 0.10.0
libtpu: 0.0.40
codegen_flags: <defaults>
</compile_context>

<pallas_src>
import functools

import numpy as np
import jax
import jax.numpy as jnp
from jax import lax
from jax.experimental import pallas as pl
from jax.experimental.pallas import tpu as pltpu

# Explicit VMEM budget: fits v5e/v6e (128 MiB physical) and v7x (64 MiB physical).
_VMEM_LIMIT = 48 * 1024 * 1024


def _round_up(x, m):
    return (x + m - 1) // m * m


# ------------------------------ Pallas kernels ------------------------------ #
def _proj_kernel(x_ref, w_ref, b_ref, gi_ref):
    """x(chunk_t,Bp,E) @ W_ih per gate -> gi block (chunk_t, 3, Bp, H).

    grid = (direction, time-chunk). b_ref already has b_hh[r], b_hh[z] folded in.
    """
    ct, bp, _ = x_ref.shape
    x = x_ref[...].reshape(ct * bp, -1)          # tile-aligned leading-dim collapse
    for g in range(3):                           # gates r, z, n -> lane-aligned slabs
        y = jnp.dot(x, w_ref[g], preferred_element_type=jnp.float32) + b_ref[g]
        gi_ref[:, g, :, :] = y.reshape(ct, bp, -1)


def input_projection(x_tm, wih_all, b_all, *, chunk_t):
    """Hoisted input projection for both directions, tiled over time chunks."""
    Tp, Bp, E = x_tm.shape
    H = wih_all.shape[-1]
    nc = Tp // chunk_t
    cost = pl.CostEstimate(
        flops=2 * Tp * Bp * E * 6 * H,
        transcendentals=0,
        bytes_accessed=4 * (2 * Tp * Bp * E + 6 * E * H + 6 * Tp * Bp * H))
    return pl.pallas_call(
        _proj_kernel,
        out_shape=jax.ShapeDtypeStruct((2, Tp, 3, Bp, H), jnp.float32),
        grid_spec=pltpu.PrefetchScalarGridSpec(
            num_scalar_prefetch=0,
            grid=(2, nc),
            in_specs=[
                pl.BlockSpec((chunk_t, Bp, E), lambda d, c: (c, 0, 0)),
                pl.BlockSpec((None, 3, E, H), lambda d, c: (d, 0, 0, 0)),
                pl.BlockSpec((None, 3, 1, H), lambda d, c: (d, 0, 0, 0)),
            ],
            out_specs=pl.BlockSpec((None, chunk_t, 3, Bp, H),
                                   lambda d, c: (d, c, 0, 0, 0)),
        ),
        compiler_params=pltpu.CompilerParams(
            dimension_semantics=("parallel", "parallel"),
            vmem_limit_bytes=_VMEM_LIMIT),
        cost_estimate=cost,
    )(x_tm, wih_all, b_all)


def _gru_rec_kernel(gi_f_ref, gi_b_ref, whh_ref, bhn_ref, h0_ref,
                    mask_f_ref, mask_b_ref, *out_refs,
                    chunk_t, with_outputs, unroll):
    """Fused bidirectional GRU recurrence. grid = (time-chunk,).

    gi_f_ref : (chunk_t, 3, Bp, H) per-gate input projections, forward chunk c
    gi_b_ref : (chunk_t, 3, Bp, H) same array, backward chunk nc-1-c
    whh_ref  : (2, 3, H, H)        per-direction, per-gate hidden weights
    bhn_ref  : (2, 1, H)           b_hh of the n gate (cannot be pre-folded)
    h0_ref   : (2, Bp, H)          initial hidden
    mask_*   : (chunk_t, Bp, H)    activity mask (packed-sequence semantics)
    out_refs = (out_f, out_b, hN) if with_outputs else (hN,)
    hN doubles as the recurrent state (resident across chunks).
    """
    if with_outputs:
        out_f_ref, out_b_ref, hn_ref = out_refs
    else:
        (hn_ref,) = out_refs

    @pl.when(pl.program_id(0) == 0)
    def _():
        hn_ref[...] = h0_ref[...]

    # Per-gate hidden->hidden weights, hoisted out of the time loop.
    wf = (whh_ref[0, 0], whh_ref[0, 1], whh_ref[0, 2])
    wb = (whh_ref[1, 0], whh_ref[1, 1], whh_ref[1, 2])
    bnf = bhn_ref[0]
    bnb = bhn_ref[1]

    def step(i, carry):
        h_f, h_b = carry
        ib = chunk_t - 1 - i                     # backward direction walks descending
        # Six independent (Bp,H)x(H,H) dots — both directions interleaved so the
        # two recurrences hide each other's MXU/EUP latency on a single TC.
        ghr_f = jnp.dot(h_f, wf[0], preferred_element_type=jnp.float32)
        ghz_f = jnp.dot(h_f, wf[1], preferred_element_type=jnp.float32)
        ghn_f = jnp.dot(h_f, wf[2], preferred_element_type=jnp.float32)
        ghr_b = jnp.dot(h_b, wb[0], preferred_element_type=jnp.float32)
        ghz_b = jnp.dot(h_b, wb[1], preferred_element_type=jnp.float32)
        ghn_b = jnp.dot(h_b, wb[2], preferred_element_type=jnp.float32)

        gif = gi_f_ref[i]                        # (3, Bp, H) per-gate, lane aligned
        gib = gi_b_ref[ib]
        r_f = jax.nn.sigmoid(gif[0] + ghr_f)
        z_f = jax.nn.sigmoid(gif[1] + ghz_f)
        n_f = jnp.tanh(gif[2] + r_f * (ghn_f + bnf))
        r_b = jax.nn.sigmoid(gib[0] + ghr_b)
        z_b = jax.nn.sigmoid(gib[1] + ghz_b)
        n_b = jnp.tanh(gib[2] + r_b * (ghn_b + bnb))

        cand_f = n_f + z_f * (h_f - n_f)         # == (1-z)*n + z*h
        cand_b = n_b + z_b * (h_b - n_b)

        a_f = mask_f_ref[i]                      # pre-broadcast (Bp, H)
        a_b = mask_b_ref[ib]
        h_f_new = h_f + a_f * (cand_f - h_f)     # frozen hidden past length
        h_b_new = h_b + a_b * (cand_b - h_b)
        if with_outputs:
            out_f_ref[i] = a_f * cand_f          # zero output past length
            out_b_ref[ib] = a_b * cand_b         # stored in natural time order
        return (h_f_new, h_b_new)

    h_f_fin, h_b_fin = lax.fori_loop(0, chunk_t, step, (hn_ref[0], hn_ref[1]),
                                     unroll=unroll)
    hn_ref[0] = h_f_fin
    hn_ref[1] = h_b_fin


def gru_birnn(gi_all, whh_all, bhn_all, h0_all, mask, *, with_outputs, chunk_t,
              unroll):
    """Both GRU directions fused per step; grid over time chunks only."""
    _, Tp, _, Bp, H = gi_all.shape
    nc = Tp // chunk_t

    kernel = functools.partial(_gru_rec_kernel, chunk_t=chunk_t,
                               with_outputs=with_outputs, unroll=unroll)

    in_specs = [
        # forward gi: ascending chunks
        pl.BlockSpec((None, chunk_t, 3, Bp, H), lambda c: (0, c, 0, 0, 0)),
        # backward gi: descending chunks (same array passed twice)
        pl.BlockSpec((None, chunk_t, 3, Bp, H), lambda c: (1, nc - 1 - c, 0, 0, 0)),
        pl.BlockSpec((2, 3, H, H), lambda c: (0, 0, 0, 0)),     # W_hh per gate
        pl.BlockSpec((2, 1, H), lambda c: (0, 0, 0)),           # b_hh[n]
        pl.BlockSpec((2, Bp, H), lambda c: (0, 0, 0)),          # h0
        pl.BlockSpec((chunk_t, Bp, H), lambda c: (c, 0, 0)),            # mask (fwd)
        pl.BlockSpec((chunk_t, Bp, H), lambda c: (nc - 1 - c, 0, 0)),   # mask (bwd)
    ]
    hn_spec = pl.BlockSpec((2, Bp, H), lambda c: (0, 0, 0))
    hn_shape = jax.ShapeDtypeStruct((2, Bp, H), jnp.float32)

    if with_outputs:
        out_shape = (jax.ShapeDtypeStruct((Tp, Bp, H), jnp.float32),
                     jax.ShapeDtypeStruct((Tp, Bp, H), jnp.float32),
                     hn_shape)
        out_specs = (pl.BlockSpec((chunk_t, Bp, H), lambda c: (c, 0, 0)),
                     pl.BlockSpec((chunk_t, Bp, H), lambda c: (nc - 1 - c, 0, 0)),
                     hn_spec)
        out_bytes = 4 * (2 * Tp * Bp * H + 2 * Bp * H)
    else:
        out_shape = hn_shape
        out_specs = hn_spec
        out_bytes = 4 * 2 * Bp * H

    cost = pl.CostEstimate(
        flops=12 * Tp * Bp * H * H,
        transcendentals=6 * Tp * Bp * H,
        bytes_accessed=4 * (6 * Tp * Bp * H + 2 * Tp * Bp * H) + out_bytes)

    res = pl.pallas_call(
        kernel,
        out_shape=out_shape,
        grid_spec=pltpu.PrefetchScalarGridSpec(
            num_scalar_prefetch=0,
            grid=(nc,),
            in_specs=in_specs,
            out_specs=out_specs,
        ),
        compiler_params=pltpu.CompilerParams(
            dimension_semantics=("arbitrary",),
            vmem_limit_bytes=_VMEM_LIMIT),
        cost_estimate=cost,
    )(gi_all, gi_all, whh_all, bhn_all, h0_all, mask, mask)

    if with_outputs:
        out_f, out_b, h_n = res
        return out_f, out_b, h_n
    return res


# ------------------------------ param handling ------------------------------ #
def init_params(key, vocab, embedding_size, hidden_size):
    """PyTorch-layout params: nn.Embedding N(0,1); nn.GRU U(-k,k), k=1/sqrt(H)."""
    E, H = embedding_size, hidden_size
    k = 1.0 / np.sqrt(H)
    keys = jax.random.split(key, 9)

    def u(kk, shape):
        return jax.random.uniform(kk, shape, jnp.float32, -k, k)

    params = {"embedding": jax.random.normal(keys[0], (vocab, E), jnp.float32)}
    for d, name in enumerate(("fwd", "bwd")):
        b = 1 + 4 * d
        params[name] = {
            "w_ih": u(keys[b + 0], (3 * H, E)),   # gate order r, z, n
            "w_hh": u(keys[b + 1], (3 * H, H)),
            "b_ih": u(keys[b + 2], (3 * H,)),
            "b_hh": u(keys[b + 3], (3 * H,)),
        }
    return params


def _fuse_params(params):
    """Per-direction, per-gate kernel weights.

    Returns wih_all (2,3,E,H), b_all (2,3,1,H) [b_ih + b_hh for r,z],
            whh_all (2,3,H,H), bhn_all (2,1,H).
    """
    H = params["fwd"]["w_hh"].shape[1]
    wih, bih, whh, bhn = [], [], [], []
    for name in ("fwd", "bwd"):
        p = params[name]
        wih.append(jnp.stack(
            [jnp.transpose(p["w_ih"][g * H:(g + 1) * H, :]) for g in range(3)], 0))
        bs = []
        for g in range(3):
            b = p["b_ih"][g * H:(g + 1) * H]
            if g < 2:                      # fold b_hh[r], b_hh[z] into the projection
                b = b + p["b_hh"][g * H:(g + 1) * H]
            bs.append(b[None, :])
        bih.append(jnp.stack(bs, 0))
        whh.append(jnp.stack(
            [jnp.transpose(p["w_hh"][g * H:(g + 1) * H, :]) for g in range(3)], 0))
        bhn.append(p["b_hh"][2 * H:3 * H][None, :])
    return (jnp.stack(wih, 0), jnp.stack(bih, 0),
            jnp.stack(whh, 0), jnp.stack(bhn, 0))


# ------------------------------ model wrapper ------------------------------- #
def encoder_rnn_forward(params, input_seq, input_lengths, *, chunk_t=32, unroll=4):
    """input_seq: (B,T) int32, input_lengths: host int array (B,)."""
    assert chunk_t % unroll == 0
    B, T = input_seq.shape
    H = params["fwd"]["w_hh"].shape[1]

    Bp = _round_up(max(B, 8), 8)          # sublane padding
    Tp = _round_up(T, chunk_t)            # time padding for chunking

    wih_all, b_all, whh_all, bhn_all = _fuse_params(params)

    # Embedding lookup (plain-JAX gather glue) -> time-major padded layout.
    emb = jnp.take(params["embedding"], input_seq, axis=0)          # (B, T, E)
    x_tm = jnp.transpose(emb, (1, 0, 2)).astype(jnp.float32)        # (T, B, E)
    x_tm = jnp.pad(x_tm, ((0, Tp - T), (0, Bp - B), (0, 0)))

    # Hoisted, tiled input projection for BOTH directions, written directly in
    # the (2, Tp, 3, Bp, H) per-direction per-gate layout the recurrence reads.
    gi_all = input_projection(x_tm, wih_all, b_all, chunk_t=chunk_t)

    # Activity masks, pre-broadcast to lane width H (packed-sequence semantics).
    lens = jnp.asarray(input_lengths, jnp.int32)
    lens_pad = jnp.pad(lens, (0, Bp - B))
    t_ids = jnp.arange(Tp)[:, None]
    b_valid = (jnp.arange(Bp) < B)[None, :]
    mask_full = ((t_ids < T) & b_valid).astype(jnp.float32)                  # run 1
    mask_len = ((t_ids < lens_pad[None, :]) & b_valid).astype(jnp.float32)   # run 2
    mask_full = jnp.broadcast_to(mask_full[:, :, None], (Tp, Bp, H))
    mask_len = jnp.broadcast_to(mask_len[:, :, None], (Tp, Bp, H))

    h0 = jnp.zeros((2, Bp, H), jnp.float32)

    # Run 1: full padded sequence, hidden=None -> final hidden only (no outputs).
    h1 = gru_birnn(gi_all, whh_all, bhn_all, h0, mask_full,
                   with_outputs=False, chunk_t=chunk_t, unroll=unroll)

    # Run 2: packed sequence (length masking), initial hidden from run 1.
    out_f, out_b, h2 = gru_birnn(gi_all, whh_all, bhn_all, h1, mask_len,
                                 with_outputs=True, chunk_t=chunk_t, unroll=unroll)

    # pad_packed_sequence trims to max(lengths); fwd + bwd halves are summed.
    t_max = int(np.max(np.asarray(input_lengths)))
    outputs = jnp.transpose(out_f + out_b, (1, 0, 2))[:B, :t_max, :]  # (B, t_max, H)
    hidden = h2[:, :B, :]                                             # (2, B, H)
    return outputs, hidden


# --------------------------- pure-JAX reference ----------------------------- #
def _gru_cell_ref(x, h, w_ih, w_hh, b_ih, b_hh):
    H = h.shape[-1]
    gi = x @ w_ih.T + b_ih
    gh = h @ w_hh.T + b_hh
    r = jax.nn.sigmoid(gi[:, :H] + gh[:, :H])
    z = jax.nn.sigmoid(gi[:, H:2 * H] + gh[:, H:2 * H])
    n = jnp.tanh(gi[:, 2 * H:] + r * gh[:, 2 * H:])
    return (1.0 - z) * n + z * h


def _gru_dir_ref(x_tm, p, h0, lens, reverse):
    T = x_tm.shape[0]
    ts = jnp.arange(T)
    if reverse:
        ts = ts[::-1]
    xs = x_tm[ts]

    def step(h, inp):
        t, xt = inp
        h_new = _gru_cell_ref(xt, h, p["w_ih"], p["w_hh"], p["b_ih"], p["b_hh"])
        active = (t < lens)[:, None]
        return jnp.where(active, h_new, h), jnp.where(active, h_new, 0.0)

    h_n, outs = lax.scan(step, h0, (ts, xs))
    if reverse:
        outs = outs[::-1]
    return outs, h_n


def encoder_rnn_forward_ref(params, input_seq, input_lengths):
    B, T = input_seq.shape
    H = params["fwd"]["w_hh"].shape[1]
    emb = jnp.take(params["embedding"], input_seq, axis=0)
    x_tm = jnp.transpose(emb, (1, 0, 2)).astype(jnp.float32)
    h0 = jnp.zeros((B, H), jnp.float32)
    lens_full = jnp.full((B,), T, jnp.int32)
    lens = jnp.asarray(input_lengths, jnp.int32)

    _, h1_f = _gru_dir_ref(x_tm, params["fwd"], h0, lens_full, False)
    _, h1_b = _gru_dir_ref(x_tm, params["bwd"], h0, lens_full, True)
    out_f, h2_f = _gru_dir_ref(x_tm, params["fwd"], h1_f, lens, False)
    out_b, h2_b = _gru_dir_ref(x_tm, params["bwd"], h1_b, lens, True)

    t_max = int(np.max(np.asarray(input_lengths)))
    outputs = jnp.transpose(out_f + out_b, (1, 0, 2))[:, :t_max, :]
    hidden = jnp.stack([h2_f, h2_b], axis=0)
    return outputs, hidden


# ----------------------------------- main ------------------------------------ #
if __name__ == "__main__":
    B, T, E, H, VOCAB = 4, 12, 16, 32, 20

    key = jax.random.PRNGKey(0)
    k_params, k_seq = jax.random.split(key)
    params = init_params(k_params, VOCAB, E, H)

    input_seq = jax.random.randint(k_seq, (B, T), 0, VOCAB, dtype=jnp.int32)
    input_lengths = np.array([12, 7, 9, 3], dtype=np.int32)  # host-side, like PyTorch

    # chunk_t=8 here so the demo exercises multiple chunks (cross-chunk hidden
    # carry + reverse backward block order); default chunk_t=32 for real sizes.
    outputs, hidden = encoder_rnn_forward(params, input_seq, input_lengths,
                                          chunk_t=8, unroll=4)
    outputs = jax.block_until_ready(outputs)
    hidden = jax.block_until_ready(hidden)

    ref_out, ref_hid = encoder_rnn_forward_ref(params, input_seq, input_lengths)
    np.testing.assert_allclose(np.asarray(outputs), np.asarray(ref_out),
                               atol=2e-3, rtol=2e-3)
    np.testing.assert_allclose(np.asarray(hidden), np.asarray(ref_hid),
                               atol=2e-3, rtol=2e-3)

    assert outputs.shape == (B, int(np.max(input_lengths)), H)
    assert hidden.shape == (2, B, H)
    print("KERNEL_OK")
</pallas_src>

<mosaic_0001>
module attributes {stable_mosaic.version = 11 : i64} {
  func.func @_proj_kernel(%arg0: i32, %arg1: i32, %arg2: memref<8x8x16xf32, #tpu.memory_space<vmem>>, %arg3: memref<1x3x16x32xf32, #tpu.memory_space<vmem>>, %arg4: memref<1x3x1x32xf32, #tpu.memory_space<vmem>>, %arg5: memref<1x8x3x8x32xf32, #tpu.memory_space<vmem>>) attributes {dimension_semantics = [#tpu.dimension_semantics<parallel>, #tpu.dimension_semantics<parallel>], iteration_bounds = array<i64: 2, 2>, scalar_prefetch = 0 : i64, scratch_operands = 0 : i64, tpu.core_type = #tpu.core_type<tc>, window_params = [{transform_indices = @transform_0, window_bounds = array<i64: 8, 8, 16>}, {transform_indices = @transform_1, window_bounds = array<i64: 1, 3, 16, 32>}, {transform_indices = @transform_2, window_bounds = array<i64: 1, 3, 1, 32>}, {transform_indices = @transform_3, window_bounds = array<i64: 1, 8, 3, 8, 32>}]} {
    %c0 = arith.constant 0 : index
    %c0_0 = arith.constant 0 : index
    %c0_1 = arith.constant 0 : index
    %0 = vector.load %arg2[%c0, %c0_0, %c0_1] : memref<8x8x16xf32, #tpu.memory_space<vmem>>, vector<8x8x16xf32>
    %1 = vector.shape_cast %0 : vector<8x8x16xf32> to vector<64x16xf32>
    %c0_2 = arith.constant 0 : index
    %c0_3 = arith.constant 0 : index
    %c0_4 = arith.constant 0 : index
    %c0_5 = arith.constant 0 : index
    %2 = vector.load %arg3[%c0_2, %c0_3, %c0_4, %c0_5] : memref<1x3x16x32xf32, #tpu.memory_space<vmem>>, vector<1x1x16x32xf32>
    %3 = vector.shape_cast %2 : vector<1x1x16x32xf32> to vector<16x32xf32>
    %cst = arith.constant dense<0.000000e+00> : vector<64x32xf32>
    %4 = tpu.matmul %1, %3, %cst {dimension_numbers = #tpu.dot_dimension_numbers<[1], [0], [0], [1], [0, 0, 1, 1], [], []>} : vector<64x16xf32>, vector<16x32xf32>, vector<64x32xf32> -> vector<64x32xf32>
    %c0_6 = arith.constant 0 : index
    %c0_7 = arith.constant 0 : index
    %c0_8 = arith.constant 0 : index
    %c0_9 = arith.constant 0 : index
    %5 = vector.load %arg4[%c0_6, %c0_7, %c0_8, %c0_9] : memref<1x3x1x32xf32, #tpu.memory_space<vmem>>, vector<1x1x1x32xf32>
    %6 = vector.shape_cast %5 : vector<1x1x1x32xf32> to vector<1x32xf32>
    %7 = vector.broadcast %6 : vector<1x32xf32> to vector<64x32xf32>
    %8 = arith.addf %4, %7 : vector<64x32xf32>
    %9 = vector.shape_cast %8 : vector<64x32xf32> to vector<8x8x32xf32>
    %c0_10 = arith.constant 0 : index
    %c0_11 = arith.constant 0 : index
    %c0_12 = arith.constant 0 : index
    %c0_13 = arith.constant 0 : index
    %c0_14 = arith.constant 0 : index
    %10 = vector.load %arg5[%c0_10, %c0_11, %c0_12, %c0_13, %c0_14] : memref<1x8x3x8x32xf32, #tpu.memory_space<vmem>>, vector<1x8x1x8x32xf32>
    %11 = vector.shape_cast %10 : vector<1x8x1x8x32xf32> to vector<8x8x32xf32>
    %12 = vector.shape_cast %9 : vector<8x8x32xf32> to vector<1x8x1x8x32xf32>
    tpu.vector_store %arg5[%c0_10, %c0_11, %c0_12, %c0_13, %c0_14], %12 {strides = array<i32>} : memref<1x8x3x8x32xf32, #tpu.memory_space<vmem>>, vector<1x8x1x8x32xf32>,
    %c0_15 = arith.constant 0 : index
    %c1 = arith.constant 1 : index
    %c0_16 = arith.constant 0 : index
    %c0_17 = arith.constant 0 : index
    %13 = vector.load %arg3[%c0_15, %c1, %c0_16, %c0_17] : memref<1x3x16x32xf32, #tpu.memory_space<vmem>>, vector<1x1x16x32xf32>
    %14 = vector.shape_cast %13 : vector<1x1x16x32xf32> to vector<16x32xf32>
    %cst_18 = arith.constant dense<0.000000e+00> : vector<64x32xf32>
    %15 = tpu.matmul %1, %14, %cst_18 {dimension_numbers = #tpu.dot_dimension_numbers<[1], [0], [0], [1], [0, 0, 1, 1], [], []>} : vector<64x16xf32>, vector<16x32xf32>, vector<64x32xf32> -> vector<64x32xf32>
    %c0_19 = arith.constant 0 : index
    %c1_20 = arith.constant 1 : index
    %c0_21 = arith.constant 0 : index
    %c0_22 = arith.constant 0 : index
    %16 = vector.load %arg4[%c0_19, %c1_20, %c0_21, %c0_22] : memref<1x3x1x32xf32, #tpu.memory_space<vmem>>, vector<1x1x1x32xf32>
    %17 = vector.shape_cast %16 : vector<1x1x1x32xf32> to vector<1x32xf32>
    %18 = vector.broadcast %17 : vector<1x32xf32> to vector<64x32xf32>
    %19 = arith.addf %15, %18 : vector<64x32xf32>
    %20 = vector.shape_cast %19 : vector<64x32xf32> to vector<8x8x32xf32>
    %c0_23 = arith.constant 0 : index
    %c0_24 = arith.constant 0 : index
    %c1_25 = arith.constant 1 : index
    %c0_26 = arith.constant 0 : index
    %c0_27 = arith.constant 0 : index
    %21 = vector.load %arg5[%c0_23, %c0_24, %c1_25, %c0_26, %c0_27] : memref<1x8x3x8x32xf32, #tpu.memory_space<vmem>>, vector<1x8x1x8x32xf32>
    %22 = vector.shape_cast %21 : vector<1x8x1x8x32xf32> to vector<8x8x32xf32>
    %23 = vector.shape_cast %20 : vector<8x8x32xf32> to vector<1x8x1x8x32xf32>
    tpu.vector_store %arg5[%c0_23, %c0_24, %c1_25, %c0_26, %c0_27], %23 {strides = array<i32>} : memref<1x8x3x8x32xf32, #tpu.memory_space<vmem>>, vector<1x8x1x8x32xf32>,
    %c0_28 = arith.constant 0 : index
    %c2 = arith.constant 2 : index
    %c0_29 = arith.constant 0 : index
    %c0_30 = arith.constant 0 : index
    %24 = vector.load %arg3[%c0_28, %c2, %c0_29, %c0_30] : memref<1x3x16x32xf32, #tpu.memory_space<vmem>>, vector<1x1x16x32xf32>
    %25 = vector.shape_cast %24 : vector<1x1x16x32xf32> to vector<16x32xf32>
    %cst_31 = arith.constant dense<0.000000e+00> : vector<64x32xf32>
    %26 = tpu.matmul %1, %25, %cst_31 {dimension_numbers = #tpu.dot_dimension_numbers<[1], [0], [0], [1], [0, 0, 1, 1], [], []>} : vector<64x16xf32>, vector<16x32xf32>, vector<64x32xf32> -> vector<64x32xf32>
    %c0_32 = arith.constant 0 : index
    %c2_33 = arith.constant 2 : index
    %c0_34 = arith.constant 0 : index
    %c0_35 = arith.constant 0 : index
    %27 = vector.load %arg4[%c0_32, %c2_33, %c0_34, %c0_35] : memref<1x3x1x32xf32, #tpu.memory_space<vmem>>, vector<1x1x1x32xf32>
    %28 = vector.shape_cast %27 : vector<1x1x1x32xf32> to vector<1x32xf32>
    %29 = vector.broadcast %28 : vector<1x32xf32> to vector<64x32xf32>
    %30 = arith.addf %26, %29 : vector<64x32xf32>
    %31 = vector.shape_cast %30 : vector<64x32xf32> to vector<8x8x32xf32>
    %c0_36 = arith.constant 0 : index
    %c0_37 = arith.constant 0 : index
    %c2_38 = arith.constant 2 : index
    %c0_39 = arith.constant 0 : index
    %c0_40 = arith.constant 0 : index
    %32 = vector.load %arg5[%c0_36, %c0_37, %c2_38, %c0_39, %c0_40] : memref<1x8x3x8x32xf32, #tpu.memory_space<vmem>>, vector<1x8x1x8x32xf32>
    %33 = vector.shape_cast %32 : vector<1x8x1x8x32xf32> to vector<8x8x32xf32>
    %34 = vector.shape_cast %31 : vector<8x8x32xf32> to vector<1x8x1x8x32xf32>
    tpu.vector_store %arg5[%c0_36, %c0_37, %c2_38, %c0_39, %c0_40], %34 {strides = array<i32>} : memref<1x8x3x8x32xf32, #tpu.memory_space<vmem>>, vector<1x8x1x8x32xf32>,
    return
  }
  func.func @transform_0(%arg0: i32, %arg1: i32) -> (i32, i32, i32) {
    %c0_i32 = arith.constant 0 : i32
    %c0_i32_0 = arith.constant 0 : i32
    %c0_i32_1 = arith.constant 0 : i32
    return %arg1, %c0_i32, %c0_i32_0 : i32, i32, i32
  }
  func.func @transform_1(%arg0: i32, %arg1: i32) -> (i32, i32, i32, i32) {
    %c0_i32 = arith.constant 0 : i32
    %c0_i32_0 = arith.constant 0 : i32
    %c0_i32_1 = arith.constant 0 : i32
    %c0_i32_2 = arith.constant 0 : i32
    return %arg0, %c0_i32, %c0_i32_0, %c0_i32_1 : i32, i32, i32, i32
  }
  func.func @transform_2(%arg0: i32, %arg1: i32) -> (i32, i32, i32, i32) {
    %c0_i32 = arith.constant 0 : i32
    %c0_i32_0 = arith.constant 0 : i32
    %c0_i32_1 = arith.constant 0 : i32
    %c0_i32_2 = arith.constant 0 : i32
    return %arg0, %c0_i32, %c0_i32_0, %c0_i32_1 : i32, i32, i32, i32
  }
  func.func @transform_3(%arg0: i32, %arg1: i32) -> (i32, i32, i32, i32, i32) {
    %c0_i32 = arith.constant 0 : i32
    %c0_i32_0 = arith.constant 0 : i32
    %c0_i32_1 = arith.constant 0 : i32
    %c0_i32_2 = arith.constant 0 : i32
    return %arg0, %arg1, %c0_i32, %c0_i32_0, %c0_i32_1 : i32, i32, i32, i32, i32
  }
}

</mosaic_0001>

<llo_original>
// kernel: tpu_custom_call.1
$region0: #{tpu_custom_call.1}
  #allocation0 [shape = 'u32[]', space=smem, size = 0x4, offset = 0x4, fixed_abs, tag = 'smem constant byte address 0x4 - core index']
  #allocation1 [shape = 'u32[144,128]{1,0:T(1,128)}', space=vmem, size = 0x12000, scoped, tag = 'internal scratch']
  %s0 = inlined_call_operand.hbm [shape: f32[16,8,16], index: 0, kind: input, shape index: {}]
  %s1 = inlined_call_operand.hbm [shape: f32[2,3,16,32], index: 1, kind: input, shape index: {}]
  %s2 = inlined_call_operand.hbm [shape: f32[2,3,1,32], index: 2, kind: input, shape index: {}]
  %s3 = inlined_call_operand.hbm [shape: f32[2,16,3,8,32], index: 3, kind: output, shape index: {}]
  %s4 = sld [smem:[#allocation0]]
  $region57: #{tpu_custom_call.1} parent=0
    _
  %s6 = ssub.s32 1, %s4
  %s7 = scalar_select 0, %s6, %s4
  $region1: #{tpu_custom_call.1} parent=0
    #allocation2 [shape = 'u8[65536]{0}', space=vmem, size = 0x10000, scoped, tag = 'input window, operand 0']
    #allocation3 [shape = 's32[2]{0}', space=sflag, size = 0x8, scoped, tag = 'scoped memory for tpu_custom_call.1']
    #allocation4 [shape = 's32[2]{0}', space=sflag, size = 0x8, scoped, tag = 'scoped memory for tpu_custom_call.1']
    #allocation5 [shape = 'u8[49152]{0}', space=vmem, size = 0xc000, scoped, tag = 'input window, operand 1']
    #allocation6 [shape = 's32[2]{0}', space=sflag, size = 0x8, scoped, tag = 'scoped memory for tpu_custom_call.1']
    #allocation7 [shape = 'u8[3072]{0}', space=vmem, size = 0xc00, scoped, tag = 'input window, operand 2']
    #allocation8 [shape = 'u8[196608]{0}', space=vmem, size = 0x30000, scoped, tag = 'output window, operand 0']
    %8 = vsyncpa [#allocation3], 0
    %s9 = scalar_lea.sflag [#allocation3], 1
    %10 = vsyncpa %s9, 0
    %11 = vsyncpa [#allocation6], 0
    %s12 = scalar_lea.sflag [#allocation6], 1
    %13 = vsyncpa %s12, 0
    %14 = vsyncpa [#allocation4], 0
    %s15 = scalar_lea.sflag [#allocation4], 1
    %16 = vsyncpa %s15, 0
    loop: start=0, step=1, limit=6
    $region2: #{tpu_custom_call.1} parent=1 // loop_pre_header
      _
    $region3: #{tpu_custom_call.1} parent=1 // loop_header
      %s18 = sphi 0, %s22
      %p19 = scmp.ge.s32.totalorder %s18, 6
      %s25 = sphi 0, %s37
      %s26 = sphi 0, %s33
      %s27 = sphi 0, %s25
      %s28 = sphi 0, %s26
      %s29 = sphi 0, %s27
      %s30 = sphi 0, %s28
      %s40 = sphi 0, %s42
      %s43 = sphi 0, %s40
      %s44 = sphi 0, %s43
      %s60 = sphi 0, %s44
      %s66 = sphi 0, %s68
      %s69 = sphi 0, %s66
      %s70 = sphi 0, %s69
      %s86 = sphi 0, %s70
      %s92 = sphi 0, %s94
      %s95 = sphi 0, %s92
      %s96 = sphi 0, %s95
      %s112 = sphi 0, %s96
      %s120 = sphi 0, %s122
      %s123 = sphi 0, %s120
      %s124 = sphi 0, %s123
      %s140 = sphi 0, %s124
    $region4: #{tpu_custom_call.1} parent=1 // loop_header_branch
      %21 = sbr.rel (%p19) target = $region8
    $region5: #{tpu_custom_call.1} parent=1 // loop_body
      %s23 = ssub.s32 %s18, 1
      %s24 = ssub.s32 %s18, 2
      %s31 = sadd.s32 1, %s26
      %p32 = scmp.ge.s32.totalorder %s31, 2
      %s33 = scalar_select %p32, 0, %s31
      %s34 = sadd.s32 1, %s25
      %s35 = scalar_select %p32, %s34, %s25
      %p36 = scmp.ge.s32.totalorder %s35, 2
      %s37 = scalar_select %p36, 0, %s35
      %s38 = ssub.s32 %s26, %s33
      %p39 = scmp.eq.s32.totalorder %s38, 0
      %s41 = sadd.s32 %s40, 1
      %s42 = scalar_select %p39, %s40, %s41
      %p45 = pneg %p39
      %p46 = scmp.eq.s32.totalorder %s18, 3
      %p47 = por %p45, %p46
      %p48 = scmp.ne.s32.totalorder %s40, %s43
      %p49 = scmp.eq.s32.totalorder %s18, 0
      %p50 = por %p48, %p49
      %p51 = scmp.ne.s32.totalorder %s40, %s43
      %p52 = scmp.eq.s32.totalorder %s23, 3
      %p53 = por %p51, %p52
      %p54 = scmp.ne.s32.totalorder %s43, %s44
      %p55 = scmp.eq.s32.totalorder %s23, 0
      %p56 = por %p54, %p55
      %p57 = scmp.ne.s32.totalorder %s43, %s44
      %p58 = scmp.eq.s32.totalorder %s24, 3
      %p59 = por %p57, %p58
      %p61 = scmp.ne.s32.totalorder %s44, %s60
      %p62 = scmp.eq.s32.totalorder %s24, 0
      %p63 = por %p61, %p62
      %s64 = ssub.s32 %s25, %s37
      %p65 = scmp.eq.s32.totalorder %s64, 0
      %s67 = sadd.s32 %s66, 1
      %s68 = scalar_select %p65, %s66, %s67
      %p71 = pneg %p65
      %p72 = scmp.eq.s32.totalorder %s18, 3
      %p73 = por %p71, %p72
      %p74 = scmp.ne.s32.totalorder %s66, %s69
      %p75 = scmp.eq.s32.totalorder %s18, 0
      %p76 = por %p74, %p75
      %p77 = scmp.ne.s32.totalorder %s66, %s69
      %p78 = scmp.eq.s32.totalorder %s23, 3
      %p79 = por %p77, %p78
      %p80 = scmp.ne.s32.totalorder %s69, %s70
      %p81 = scmp.eq.s32.totalorder %s23, 0
      %p82 = por %p80, %p81
      %p83 = scmp.ne.s32.totalorder %s69, %s70
      %p84 = scmp.eq.s32.totalorder %s24, 3
      %p85 = por %p83, %p84
      %p87 = scmp.ne.s32.totalorder %s70, %s86
      %p88 = scmp.eq.s32.totalorder %s24, 0
      %p89 = por %p87, %p88
      %s90 = ssub.s32 %s25, %s37
      %p91 = scmp.eq.s32.totalorder %s90, 0
      %s93 = sadd.s32 %s92, 1
      %s94 = scalar_select %p91, %s92, %s93
      %p97 = pneg %p91
      %p98 = scmp.eq.s32.totalorder %s18, 3
      %p99 = por %p97, %p98
      %p100 = scmp.ne.s32.totalorder %s92, %s95
      %p101 = scmp.eq.s32.totalorder %s18, 0
      %p102 = por %p100, %p101
      %p103 = scmp.ne.s32.totalorder %s92, %s95
      %p104 = scmp.eq.s32.totalorder %s23, 3
      %p105 = por %p103, %p104
      %p106 = scmp.ne.s32.totalorder %s95, %s96
      %p107 = scmp.eq.s32.totalorder %s23, 0
      %p108 = por %p106, %p107
      %p109 = scmp.ne.s32.totalorder %s95, %s96
      %p110 = scmp.eq.s32.totalorder %s24, 3
      %p111 = por %p109, %p110
      %p113 = scmp.ne.s32.totalorder %s96, %s112
      %p114 = scmp.eq.s32.totalorder %s24, 0
      %p115 = por %p113, %p114
      %s116 = ssub.s32 %s25, %s37
      %s117 = ssub.s32 %s26, %s33
      %s118 = sor.u32 %s116, %s117
      %p119 = scmp.eq.s32.totalorder %s118, 0
      %s121 = sadd.s32 %s120, 1
      %s122 = scalar_select %p119, %s120, %s121
      %p125 = pneg %p119
      %p126 = scmp.eq.s32.totalorder %s18, 3
      %p127 = por %p125, %p126
      %p128 = scmp.ne.s32.totalorder %s120, %s123
      %p129 = scmp.eq.s32.totalorder %s18, 0
      %p130 = por %p128, %p129
      %p131 = scmp.ne.s32.totalorder %s120, %s123
      %p132 = scmp.eq.s32.totalorder %s23, 3
      %p133 = por %p131, %p132
      %p134 = scmp.ne.s32.totalorder %s123, %s124
      %p135 = scmp.eq.s32.totalorder %s23, 0
      %p136 = por %p134, %p135
      %p137 = scmp.ne.s32.totalorder %s123, %s124
      %p138 = scmp.eq.s32.totalorder %s24, 3
      %p139 = por %p137, %p138
      %p141 = scmp.ne.s32.totalorder %s124, %s140
      %p142 = scmp.eq.s32.totalorder %s24, 0
      %p143 = por %p141, %p142
      %p144 = scmp.le.s32.totalorder 1, %s18
      %p145 = scmp.lt.s32.totalorder %s18, 5
      %p146 = pnand %p144, %p145
      %p147 = pneg %p146
      // Predicated region
      $region9: #{tpu_custom_call.1} parent=5 // pred_check
        _
      $region10: #{tpu_custom_call.1} parent=5 // pred_check_branch
        %149 = sbr.rel (%p146) target = $region12
      $region11: #{tpu_custom_call.1} parent=5 // pred_region
        %s150 = ssub.s32 %s18, 1
      $region12: #{tpu_custom_call.1} parent=5 // pred_fallthru
        _
      %p151 = scmp.lt.s32.totalorder %s18, 4
      // Predicated region
      $region13: #{tpu_custom_call.1} parent=5 // pred_check
        %p152 = pneg %p151
      $region14: #{tpu_custom_call.1} parent=5 // pred_check_branch
        %154 = sbr.rel (%p152) target = $region16
      $region15: #{tpu_custom_call.1} parent=5 // pred_region
        // Predicated region
        $region17: #{tpu_custom_call.1} parent=15 // pred_check
          %p155 = pneg %p50
        $region18: #{tpu_custom_call.1} parent=15 // pred_check_branch
          %157 = sbr.rel (%p155) target = $region20
        $region19: #{tpu_custom_call.1} parent=15 // pred_region
          %s158 = sand.u32 %s40, 1
          %s159 = scalar_lea.sflag [#allocation3], %s158
          %s160 = sand.u32 %s40, 1
          %s161 = smul.addr %s160, 64
          %s162 = scalar_lea.vmem [#allocation2], %s161
          %s163 = smul.u32 8, %s26
          %s165 = ssub.s32 1024, 1024
          %166 = vsyncadd %s159, %s165
          %s167 = smul.addr %s163, 128
          %s168 = scalar_lea.hbm %s0, %s167
          %s169 = sshll.u32 %s162, 4
          %s170 = int_to_ptr.vmem [resolvable:$true] %s169
          %175 = dma.hbm_to_vmem [thread:$0]  %s168, 1024, %s170, %s159, 128, 128, 8
        $region20: #{tpu_custom_call.1} parent=15 // pred_fallthru
          _
        // Predicated region
        $region21: #{tpu_custom_call.1} parent=15 // pred_check
          %p176 = pneg %p76
        $region22: #{tpu_custom_call.1} parent=15 // pred_check_branch
          %178 = sbr.rel (%p176) target = $region24
        $region23: #{tpu_custom_call.1} parent=15 // pred_region
          %s179 = sand.u32 %s18, 1
          %s180 = scalar_lea.sflag [#allocation6], %s179
          %s181 = sand.u32 %s66, 1
          %s182 = smul.addr %s181, 48
          %s183 = scalar_lea.vmem [#allocation5], %s182
          %s185 = ssub.s32 768, 768
          %186 = vsyncadd %s180, %s185
          %s187 = smul.addr %s25, 6
          %s188 = smul.addr %s187, 128
          %s189 = scalar_lea.hbm %s1, %s188
          %s190 = sshll.u32 %s183, 4
          %s191 = int_to_ptr.vmem [resolvable:$true] %s190
          %196 = dma.hbm_to_vmem [thread:$0]  %s189, 768, %s191, %s180, 128, 128, 8
        $region24: #{tpu_custom_call.1} parent=15 // pred_fallthru
          _
        // Predicated region
        $region25: #{tpu_custom_call.1} parent=15 // pred_check
          %p197 = pneg %p102
        $region26: #{tpu_custom_call.1} parent=15 // pred_check_branch
          %199 = sbr.rel (%p197) target = $region28
        $region27: #{tpu_custom_call.1} parent=15 // pred_region
          %s200 = sand.u32 %s18, 1
          %s201 = scalar_lea.sflag [#allocation6], %s200
          %s202 = sand.u32 %s92, 1
          %s203 = smul.addr %s202, 3
          %s204 = scalar_lea.vmem [#allocation7], %s203
          %s206 = ssub.s32 48, 48
          %207 = vsyncadd %s201, %s206
          %s208 = smul.addr %s25, 3
          %s209 = smul.addr %s208, 16
          %s210 = scalar_lea.hbm %s2, %s209
          %s211 = sshll.u32 %s204, 4
          %s212 = int_to_ptr.vmem [resolvable:$true] %s211
          %217 = dma.hbm_to_vmem [thread:$0]  %s210, 48, %s212, %s201, 16, 16, 1
        $region28: #{tpu_custom_call.1} parent=15 // pred_fallthru
          _
      $region16: #{tpu_custom_call.1} parent=5 // pred_fallthru
        _
      %p218 = scmp.le.s32.totalorder 1, %s18
      %p219 = scmp.lt.s32.totalorder %s18, 5
      %p220 = pnand %p218, %p219
      %p221 = pneg %p220
      // Predicated region
      $region29: #{tpu_custom_call.1} parent=5 // pred_check
        _
      $region30: #{tpu_custom_call.1} parent=5 // pred_check_branch
        %223 = sbr.rel (%p220) target = $region32
      $region31: #{tpu_custom_call.1} parent=5 // pred_region
        %s224 = ssub.s32 %s18, 1
        %s225 = sand.u32 %s43, 1
        %s226 = scalar_lea.sflag [#allocation3], %s225
        %s227 = sand.u32 %s43, 1
        %s228 = smul.addr %s227, 64
        %s229 = scalar_lea.vmem [#allocation2], %s228
        // Predicated region
        $region33: #{tpu_custom_call.1} parent=31 // pred_check
          %p230 = pneg %p56
        $region34: #{tpu_custom_call.1} parent=31 // pred_check_branch
          %232 = sbr.rel (%p230) target = $region36
        $region35: #{tpu_custom_call.1} parent=31 // pred_region
          %233 = dma.done %s226, 1024
        $region36: #{tpu_custom_call.1} parent=31 // pred_fallthru
          _
        %s234 = sand.u32 %s23, 1
        %s235 = scalar_lea.sflag [#allocation6], %s234
        %s236 = sand.u32 %s69, 1
        %s237 = smul.addr %s236, 48
        %s238 = scalar_lea.vmem [#allocation5], %s237
        // Predicated region
        $region37: #{tpu_custom_call.1} parent=31 // pred_check
          %p239 = pneg %p82
        $region38: #{tpu_custom_call.1} parent=31 // pred_check_branch
          %241 = sbr.rel (%p239) target = $region40
        $region39: #{tpu_custom_call.1} parent=31 // pred_region
          %242 = dma.done %s235, 768
        $region40: #{tpu_custom_call.1} parent=31 // pred_fallthru
          _
        %s243 = sand.u32 %s23, 1
        %s244 = scalar_lea.sflag [#allocation6], %s243
        %s245 = sand.u32 %s95, 1
        %s246 = smul.addr %s245, 3
        %s247 = scalar_lea.vmem [#allocation7], %s246
        // Predicated region
        $region41: #{tpu_custom_call.1} parent=31 // pred_check
          %p248 = pneg %p108
        $region42: #{tpu_custom_call.1} parent=31 // pred_check_branch
          %250 = sbr.rel (%p248) target = $region44
        $region43: #{tpu_custom_call.1} parent=31 // pred_region
          %251 = dma.done %s244, 48
        $region44: #{tpu_custom_call.1} parent=31 // pred_fallthru
          _
        %s252 = sand.u32 %s43, 1
        %s253 = scalar_lea.sflag [#allocation3], %s252
        %s254 = sand.u32 %s43, 1
        %s255 = smul.addr %s254, 64
        %s256 = scalar_lea.vmem [#allocation2], %s255
        %p257 = pneg %p56
        %p258 = pneg %p53
        %s259 = sand.u32 %s23, 1
        %s260 = scalar_lea.sflag [#allocation6], %s259
        %s261 = sand.u32 %s69, 1
        %s262 = smul.addr %s261, 48
        %s263 = scalar_lea.vmem [#allocation5], %s262
        %p264 = pneg %p82
        %p265 = pneg %p79
        %s266 = sand.u32 %s23, 1
        %s267 = scalar_lea.sflag [#allocation6], %s266
        %s268 = sand.u32 %s95, 1
        %s269 = smul.addr %s268, 3
        %s270 = scalar_lea.vmem [#allocation7], %s269
        %p271 = pneg %p108
        %p272 = pneg %p105
        %p273 = pneg %p136
        %p274 = pneg %p133
        %s275 = sand.u32 %s123, 1
        %s276 = scalar_lea.sflag [#allocation4], %s275
        %s277 = sand.u32 %s123, 1
        %s278 = smul.addr %s277, 192
        %s279 = scalar_lea.vmem [#allocation8], %s278
        %s280 = smul.u32 8, %s28
        %s281 = smul.u32 8, %s28
        %v282 = vld [vmem:[%s229] sm:$0xff]
        %v283 = vld [vmem:[%s229 + $0x8] sm:$0xff]
        %v284 = vld [vmem:[%s229 + $0x10] sm:$0xff]
        %v285 = vld [vmem:[%s229 + $0x18] sm:$0xff]
        %v286 = vld [vmem:[%s229 + $0x20] sm:$0xff]
        %v287 = vld [vmem:[%s229 + $0x28] sm:$0xff]
        %v288 = vld [vmem:[%s229 + $0x30] sm:$0xff]
        %v289 = vld [vmem:[%s229 + $0x38] sm:$0xff]
        %v290 = vld [vmem:[%s238] sm:$0xff]
        %v291 = vld [vmem:[%s238 + $0x8] sm:$0xff]
        %v292 = vld [vmem:[%s247] sm:$0x1]
        %v294 = vlaneseq
        %v295 = vshrl.u32 %v294, 7
        %v296 = vsub.s32 0, %v295
        %v297 = vrot.slane %v292, %v296
        %vm299 = vcmask 130048
        %v301 = vsel %vm299, %v282, 0
        %v304 = vsel %vm299, %v283, 0
        %v307 = vsel %vm299, %v284, 0
        %v310 = vsel %vm299, %v285, 0
        %v313 = vsel %vm299, %v286, 0
        %v316 = vsel %vm299, %v287, 0
        %v319 = vsel %vm299, %v288, 0
        %v322 = vsel %vm299, %v289, 0
        %324 = vmatprep.subr.mxu0 0.0
        %325 = vmatpush1.msra.mxu0 0.0
        %326 = vmatprep.subr.mxu0 0.0
        %327 = vmatpush1.msra.mxu0 0.0
        %328 = vmatprep.subr.mxu0 0.0
        %329 = vmatpush1.msra.mxu0 0.0
        %330 = vmatprep.subr.mxu0 0.0
        %331 = vmatpush1.msra.mxu0 0.0
        %332 = vmatprep.subr.mxu0 0.0
        %333 = vmatpush1.msra.mxu0 0.0
        %334 = vmatprep.subr.mxu0 0.0
        %335 = vmatpush1.msra.mxu0 0.0
        %336 = vmatprep.subr.mxu0 0.0
        %337 = vmatpush1.msra.mxu0 0.0
        %338 = vmatprep.subr.mxu0 0.0
        %339 = vmatpush1.msra.mxu0 0.0
        %340 = vmatprep.subr.mxu0 0.0
        %341 = vmatpush1.msra.mxu0 0.0
        %342 = vmatprep.subr.mxu0 0.0
        %343 = vmatpush1.msra.mxu0 0.0
        %344 = vmatprep.subr.mxu0 0.0
        %345 = vmatpush1.msra.mxu0 0.0
        %346 = vmatprep.subr.mxu0 0.0
        %347 = vmatpush1.msra.mxu0 0.0
        %348 = vmatprep.subr.mxu0 0.0
        %349 = vmatpush1.msra.mxu0 0.0
        %350 = vmatprep.subr.mxu0 0.0
        %351 = vmatpush1.msra.mxu0 0.0
        %352 = vmatprep.subr.mxu0 0.0
        %353 = vmatpush1.msra.mxu0 %v291
        %354 = vmatprep.subr.mxu0 0.0
        %355 = vmatpush1.msra.mxu0 %v290
        %356 = vmatprep.subr.mxu0 0.0
        %357 = vmatpush2.msra.mxu0 0.0
        %358 = vmatprep.subr.mxu0 0.0
        %359 = vmatpush2.msra.mxu0 0.0
        %360 = vmatprep.subr.mxu0 0.0
        %361 = vmatpush2.msra.mxu0 0.0
        %362 = vmatprep.subr.mxu0 0.0
        %363 = vmatpush2.msra.mxu0 0.0
        %364 = vmatprep.subr.mxu0 0.0
        %365 = vmatpush2.msra.mxu0 0.0
        %366 = vmatprep.subr.mxu0 0.0
        %367 = vmatpush2.msra.mxu0 0.0
        %368 = vmatprep.subr.mxu0 0.0
        %369 = vmatpush2.msra.mxu0 0.0
        %370 = vmatprep.subr.mxu0 0.0
        %371 = vmatpush2.msra.mxu0 0.0
        %372 = vmatprep.subr.mxu0 0.0
        %373 = vmatpush2.msra.mxu0 0.0
        %374 = vmatprep.subr.mxu0 0.0
        %375 = vmatpush2.msra.mxu0 0.0
        %376 = vmatprep.subr.mxu0 0.0
        %377 = vmatpush2.msra.mxu0 0.0
        %378 = vmatprep.subr.mxu0 0.0
        %379 = vmatpush2.msra.mxu0 0.0
        %380 = vmatprep.subr.mxu0 0.0
        %381 = vmatpush2.msra.mxu0 0.0
        %382 = vmatprep.subr.mxu0 0.0
        %383 = vmatpush2.msra.mxu0 0.0
        %384 = vmatprep.subr.mxu0 0.0
        %385 = vmatpush2.msra.mxu0 0.0
        %386 = vmatprep.subr.mxu0 0.0
        %387 = vmatpush2.msra.mxu0 0.0
        %388 = vmatprep.mubr.f32.mxu0 0.0
        %389 = vmatmul.mubr.f32.gmra.mxu0 %v301
        %v390 = vpop.f32.mrf.mxu0
        %v391 = vadd.f32 %v297, %v390
        %v392 = vpop.f32.mrf.mxu0
        %393 = vmatprep.mubr.f32.mxu0 0.0
        %394 = vmatmul.mubr.f32.gmra.mxu0 %v304
        %v395 = vpop.f32.mrf.mxu0
        %v396 = vadd.f32 %v297, %v395
        %v397 = vpop.f32.mrf.mxu0
        %398 = vmatprep.mubr.f32.mxu0 0.0
        %399 = vmatmul.mubr.f32.gmra.mxu0 %v307
        %v400 = vpop.f32.mrf.mxu0
        %v401 = vadd.f32 %v297, %v400
        %v402 = vpop.f32.mrf.mxu0
        %403 = vmatprep.mubr.f32.mxu0 0.0
        %404 = vmatmul.mubr.f32.gmra.mxu0 %v310
        %v405 = vpop.f32.mrf.mxu0
        %v406 = vadd.f32 %v297, %v405
        %v407 = vpop.f32.mrf.mxu0
        %408 = vmatprep.mubr.f32.mxu0 0.0
        %409 = vmatmul.mubr.f32.gmra.mxu0 %v313
        %v410 = vpop.f32.mrf.mxu0
        %v411 = vadd.f32 %v297, %v410
        %v412 = vpop.f32.mrf.mxu0
        %413 = vmatprep.mubr.f32.mxu0 0.0
        %414 = vmatmul.mubr.f32.gmra.mxu0 %v316
        %v415 = vpop.f32.mrf.mxu0
        %v416 = vadd.f32 %v297, %v415
        %v417 = vpop.f32.mrf.mxu0
        %418 = vmatprep.mubr.f32.mxu0 0.0
        %419 = vmatmul.mubr.f32.gmra.mxu0 %v319
        %v420 = vpop.f32.mrf.mxu0
        %v421 = vadd.f32 %v297, %v420
        %v422 = vpop.f32.mrf.mxu0
        %423 = vmatprep.mubr.f32.mxu0 0.0
        %424 = vmatmul.mubr.f32.gmra.mxu0 %v322
        %v425 = vpop.f32.mrf.mxu0
        %v426 = vadd.f32 %v297, %v425
        %v427 = vpop.f32.mrf.mxu0
        %428 = vdwg.mxu0
        %vm429 = vcmask 261120
        %430 = vst.msk [vmem:[%s279] sm:$0xff] %vm429, %v391
        %431 = vst.msk [vmem:[%s279 + $0x18] sm:$0xff] %vm429, %v396
        %432 = vst.msk [vmem:[%s279 + $0x30] sm:$0xff] %vm429, %v401
        %433 = vst.msk [vmem:[%s279 + $0x48] sm:$0xff] %vm429, %v406
        %434 = vst.msk [vmem:[%s279 + $0x60] sm:$0xff] %vm429, %v411
        %435 = vst.msk [vmem:[%s279 + $0x78] sm:$0xff] %vm429, %v416
        %436 = vst.msk [vmem:[%s279 + $0x90] sm:$0xff] %vm429, %v421
        %437 = vst.msk [vmem:[%s279 + $0xa8] sm:$0xff] %vm429, %v426
        %s438 = scalar_lea.vmem %s238, 16 [#allocation5]
        %v439 = vld [vmem:[%s438] sm:$0xff]
        %v440 = vld [vmem:[%s438 + $0x8] sm:$0xff]
        %s441 = scalar_lea.vmem %s247, 1 [#allocation7]
        %v442 = vld [vmem:[%s441] sm:$0x1]
        %v444 = vlaneseq
        %v445 = vshrl.u32 %v444, 7
        %v446 = vsub.s32 0, %v445
        %v447 = vrot.slane %v442, %v446
        %449 = vmatprep.subr.mxu0 0.0
        %450 = vmatpush1.msra.mxu0 0.0
        %451 = vmatprep.subr.mxu0 0.0
        %452 = vmatpush1.msra.mxu0 0.0
        %453 = vmatprep.subr.mxu0 0.0
        %454 = vmatpush1.msra.mxu0 0.0
        %455 = vmatprep.subr.mxu0 0.0
        %456 = vmatpush1.msra.mxu0 0.0
        %457 = vmatprep.subr.mxu0 0.0
        %458 = vmatpush1.msra.mxu0 0.0
        %459 = vmatprep.subr.mxu0 0.0
        %460 = vmatpush1.msra.mxu0 0.0
        %461 = vmatprep.subr.mxu0 0.0
        %462 = vmatpush1.msra.mxu0 0.0
        %463 = vmatprep.subr.mxu0 0.0
        %464 = vmatpush1.msra.mxu0 0.0
        %465 = vmatprep.subr.mxu0 0.0
        %466 = vmatpush1.msra.mxu0 0.0
        %467 = vmatprep.subr.mxu0 0.0
        %468 = vmatpush1.msra.mxu0 0.0
        %469 = vmatprep.subr.mxu0 0.0
        %470 = vmatpush1.msra.mxu0 0.0
        %471 = vmatprep.subr.mxu0 0.0
        %472 = vmatpush1.msra.mxu0 0.0
        %473 = vmatprep.subr.mxu0 0.0
        %474 = vmatpush1.msra.mxu0 0.0
        %475 = vmatprep.subr.mxu0 0.0
        %476 = vmatpush1.msra.mxu0 0.0
        %477 = vmatprep.subr.mxu0 0.0
        %478 = vmatpush1.msra.mxu0 %v440
        %479 = vmatprep.subr.mxu0 0.0
        %480 = vmatpush1.msra.mxu0 %v439
        %481 = vmatprep.subr.mxu0 0.0
        %482 = vmatpush2.msra.mxu0 0.0
        %483 = vmatprep.subr.mxu0 0.0
        %484 = vmatpush2.msra.mxu0 0.0
        %485 = vmatprep.subr.mxu0 0.0
        %486 = vmatpush2.msra.mxu0 0.0
        %487 = vmatprep.subr.mxu0 0.0
        %488 = vmatpush2.msra.mxu0 0.0
        %489 = vmatprep.subr.mxu0 0.0
        %490 = vmatpush2.msra.mxu0 0.0
        %491 = vmatprep.subr.mxu0 0.0
        %492 = vmatpush2.msra.mxu0 0.0
        %493 = vmatprep.subr.mxu0 0.0
        %494 = vmatpush2.msra.mxu0 0.0
        %495 = vmatprep.subr.mxu0 0.0
        %496 = vmatpush2.msra.mxu0 0.0
        %497 = vmatprep.subr.mxu0 0.0
        %498 = vmatpush2.msra.mxu0 0.0
        %499 = vmatprep.subr.mxu0 0.0
        %500 = vmatpush2.msra.mxu0 0.0
        %501 = vmatprep.subr.mxu0 0.0
        %502 = vmatpush2.msra.mxu0 0.0
        %503 = vmatprep.subr.mxu0 0.0
        %504 = vmatpush2.msra.mxu0 0.0
        %505 = vmatprep.subr.mxu0 0.0
        %506 = vmatpush2.msra.mxu0 0.0
        %507 = vmatprep.subr.mxu0 0.0
        %508 = vmatpush2.msra.mxu0 0.0
        %509 = vmatprep.subr.mxu0 0.0
        %510 = vmatpush2.msra.mxu0 0.0
        %511 = vmatprep.subr.mxu0 0.0
        %512 = vmatpush2.msra.mxu0 0.0
        %513 = vmatprep.mubr.f32.mxu0 0.0
        %514 = vmatmul.mubr.f32.gmra.mxu0 %v301
        %v515 = vpop.f32.mrf.mxu0
        %v516 = vadd.f32 %v447, %v515
        %v517 = vpop.f32.mrf.mxu0
        %518 = vmatprep.mubr.f32.mxu0 0.0
        %519 = vmatmul.mubr.f32.gmra.mxu0 %v304
        %v520 = vpop.f32.mrf.mxu0
        %v521 = vadd.f32 %v447, %v520
        %v522 = vpop.f32.mrf.mxu0
        %523 = vmatprep.mubr.f32.mxu0 0.0
        %524 = vmatmul.mubr.f32.gmra.mxu0 %v307
        %v525 = vpop.f32.mrf.mxu0
        %v526 = vadd.f32 %v447, %v525
        %v527 = vpop.f32.mrf.mxu0
        %528 = vmatprep.mubr.f32.mxu0 0.0
        %529 = vmatmul.mubr.f32.gmra.mxu0 %v310
        %v530 = vpop.f32.mrf.mxu0
        %v531 = vadd.f32 %v447, %v530
        %v532 = vpop.f32.mrf.mxu0
        %533 = vmatprep.mubr.f32.mxu0 0.0
        %534 = vmatmul.mubr.f32.gmra.mxu0 %v313
        %v535 = vpop.f32.mrf.mxu0
        %v536 = vadd.f32 %v447, %v535
        %v537 = vpop.f32.mrf.mxu0
        %538 = vmatprep.mubr.f32.mxu0 0.0
        %539 = vmatmul.mubr.f32.gmra.mxu0 %v316
        %v540 = vpop.f32.mrf.mxu0
        %v541 = vadd.f32 %v447, %v540
        %v542 = vpop.f32.mrf.mxu0
        %543 = vmatprep.mubr.f32.mxu0 0.0
        %544 = vmatmul.mubr.f32.gmra.mxu0 %v319
        %v545 = vpop.f32.mrf.mxu0
        %v546 = vadd.f32 %v447, %v545
        %v547 = vpop.f32.mrf.mxu0
        %548 = vmatprep.mubr.f32.mxu0 0.0
        %549 = vmatmul.mubr.f32.gmra.mxu0 %v322
        %v550 = vpop.f32.mrf.mxu0
        %v551 = vadd.f32 %v447, %v550
        %v552 = vpop.f32.mrf.mxu0
        %553 = vdwg.mxu0
        %s554 = scalar_lea.vmem %s279, 8 [#allocation8]
        %555 = vst.msk [vmem:[%s554] sm:$0xff] %vm429, %v516
        %556 = vst.msk [vmem:[%s554 + $0x18] sm:$0xff] %vm429, %v521
        %557 = vst.msk [vmem:[%s554 + $0x30] sm:$0xff] %vm429, %v526
        %558 = vst.msk [vmem:[%s554 + $0x48] sm:$0xff] %vm429, %v531
        %559 = vst.msk [vmem:[%s554 + $0x60] sm:$0xff] %vm429, %v536
        %560 = vst.msk [vmem:[%s554 + $0x78] sm:$0xff] %vm429, %v541
        %561 = vst.msk [vmem:[%s554 + $0x90] sm:$0xff] %vm429, %v546
        %562 = vst.msk [vmem:[%s554 + $0xa8] sm:$0xff] %vm429, %v551
        %s563 = scalar_lea.vmem %s238, 32 [#allocation5]
        %v564 = vld [vmem:[%s563] sm:$0xff]
        %v565 = vld [vmem:[%s563 + $0x8] sm:$0xff]
        %s566 = scalar_lea.vmem %s247, 2 [#allocation7]
        %v567 = vld [vmem:[%s566] sm:$0x1]
        %v569 = vlaneseq
        %v570 = vshrl.u32 %v569, 7
        %v571 = vsub.s32 0, %v570
        %v572 = vrot.slane %v567, %v571
        %574 = vmatprep.subr.mxu0 0.0
        %575 = vmatpush1.msra.mxu0 0.0
        %576 = vmatprep.subr.mxu0 0.0
        %577 = vmatpush1.msra.mxu0 0.0
        %578 = vmatprep.subr.mxu0 0.0
        %579 = vmatpush1.msra.mxu0 0.0
        %580 = vmatprep.subr.mxu0 0.0
        %581 = vmatpush1.msra.mxu0 0.0
        %582 = vmatprep.subr.mxu0 0.0
        %583 = vmatpush1.msra.mxu0 0.0
        %584 = vmatprep.subr.mxu0 0.0
        %585 = vmatpush1.msra.mxu0 0.0
        %586 = vmatprep.subr.mxu0 0.0
        %587 = vmatpush1.msra.mxu0 0.0
        %588 = vmatprep.subr.mxu0 0.0
        %589 = vmatpush1.msra.mxu0 0.0
        %590 = vmatprep.subr.mxu0 0.0
        %591 = vmatpush1.msra.mxu0 0.0
        %592 = vmatprep.subr.mxu0 0.0
        %593 = vmatpush1.msra.mxu0 0.0
        %594 = vmatprep.subr.mxu0 0.0
        %595 = vmatpush1.msra.mxu0 0.0
        %596 = vmatprep.subr.mxu0 0.0
        %597 = vmatpush1.msra.mxu0 0.0
        %598 = vmatprep.subr.mxu0 0.0
        %599 = vmatpush1.msra.mxu0 0.0
        %600 = vmatprep.subr.mxu0 0.0
        %601 = vmatpush1.msra.mxu0 0.0
        %602 = vmatprep.subr.mxu0 0.0
        %603 = vmatpush1.msra.mxu0 %v565
        %604 = vmatprep.subr.mxu0 0.0
        %605 = vmatpush1.msra.mxu0 %v564
        %606 = vmatprep.subr.mxu0 0.0
        %607 = vmatpush2.msra.mxu0 0.0
        %608 = vmatprep.subr.mxu0 0.0
        %609 = vmatpush2.msra.mxu0 0.0
        %610 = vmatprep.subr.mxu0 0.0
        %611 = vmatpush2.msra.mxu0 0.0
        %612 = vmatprep.subr.mxu0 0.0
        %613 = vmatpush2.msra.mxu0 0.0
        %614 = vmatprep.subr.mxu0 0.0
        %615 = vmatpush2.msra.mxu0 0.0
        %616 = vmatprep.subr.mxu0 0.0
        %617 = vmatpush2.msra.mxu0 0.0
        %618 = vmatprep.subr.mxu0 0.0
        %619 = vmatpush2.msra.mxu0 0.0
        %620 = vmatprep.subr.mxu0 0.0
        %621 = vmatpush2.msra.mxu0 0.0
        %622 = vmatprep.subr.mxu0 0.0
        %623 = vmatpush2.msra.mxu0 0.0
        %624 = vmatprep.subr.mxu0 0.0
        %625 = vmatpush2.msra.mxu0 0.0
        %626 = vmatprep.subr.mxu0 0.0
        %627 = vmatpush2.msra.mxu0 0.0
        %628 = vmatprep.subr.mxu0 0.0
        %629 = vmatpush2.msra.mxu0 0.0
        %630 = vmatprep.subr.mxu0 0.0
        %631 = vmatpush2.msra.mxu0 0.0
        %632 = vmatprep.subr.mxu0 0.0
        %633 = vmatpush2.msra.mxu0 0.0
        %634 = vmatprep.subr.mxu0 0.0
        %635 = vmatpush2.msra.mxu0 0.0
        %636 = vmatprep.subr.mxu0 0.0
        %637 = vmatpush2.msra.mxu0 0.0
        %638 = vmatprep.mubr.f32.mxu0 0.0
        %639 = vmatmul.mubr.f32.gmra.mxu0 %v301
        %v640 = vpop.f32.mrf.mxu0
        %v641 = vadd.f32 %v572, %v640
        %v642 = vpop.f32.mrf.mxu0
        %643 = vmatprep.mubr.f32.mxu0 0.0
        %644 = vmatmul.mubr.f32.gmra.mxu0 %v304
        %v645 = vpop.f32.mrf.mxu0
        %v646 = vadd.f32 %v572, %v645
        %v647 = vpop.f32.mrf.mxu0
        %648 = vmatprep.mubr.f32.mxu0 0.0
        %649 = vmatmul.mubr.f32.gmra.mxu0 %v307
        %v650 = vpop.f32.mrf.mxu0
        %v651 = vadd.f32 %v572, %v650
        %v652 = vpop.f32.mrf.mxu0
        %653 = vmatprep.mubr.f32.mxu0 0.0
        %654 = vmatmul.mubr.f32.gmra.mxu0 %v310
        %v655 = vpop.f32.mrf.mxu0
        %v656 = vadd.f32 %v572, %v655
        %v657 = vpop.f32.mrf.mxu0
        %658 = vmatprep.mubr.f32.mxu0 0.0
        %659 = vmatmul.mubr.f32.gmra.mxu0 %v313
        %v660 = vpop.f32.mrf.mxu0
        %v661 = vadd.f32 %v572, %v660
        %v662 = vpop.f32.mrf.mxu0
        %663 = vmatprep.mubr.f32.mxu0 0.0
        %664 = vmatmul.mubr.f32.gmra.mxu0 %v316
        %v665 = vpop.f32.mrf.mxu0
        %v666 = vadd.f32 %v572, %v665
        %v667 = vpop.f32.mrf.mxu0
        %668 = vmatprep.mubr.f32.mxu0 0.0
        %669 = vmatmul.mubr.f32.gmra.mxu0 %v319
        %v670 = vpop.f32.mrf.mxu0
        %v671 = vadd.f32 %v572, %v670
        %v672 = vpop.f32.mrf.mxu0
        %673 = vmatprep.mubr.f32.mxu0 0.0
        %674 = vmatmul.mubr.f32.gmra.mxu0 %v322
        %v675 = vpop.f32.mrf.mxu0
        %v676 = vadd.f32 %v572, %v675
        %v677 = vpop.f32.mrf.mxu0
        %678 = vdwg.mxu0
        %s679 = scalar_lea.vmem %s279, 16 [#allocation8]
        %680 = vst.msk [vmem:[%s679] sm:$0xff] %vm429, %v641
        %681 = vst.msk [vmem:[%s679 + $0x18] sm:$0xff] %vm429, %v646
        %682 = vst.msk [vmem:[%s679 + $0x30] sm:$0xff] %vm429, %v651
        %683 = vst.msk [vmem:[%s679 + $0x48] sm:$0xff] %vm429, %v656
        %684 = vst.msk [vmem:[%s679 + $0x60] sm:$0xff] %vm429, %v661
        %685 = vst.msk [vmem:[%s679 + $0x78] sm:$0xff] %vm429, %v666
        %686 = vst.msk [vmem:[%s679 + $0x90] sm:$0xff] %vm429, %v671
        %687 = vst.msk [vmem:[%s679 + $0xa8] sm:$0xff] %vm429, %v676
        %s688 = sand.u32 %s123, 1
        %s689 = scalar_lea.sflag [#allocation4], %s688
        %s690 = sand.u32 %s123, 1
        %s691 = smul.addr %s690, 192
        %s692 = scalar_lea.vmem [#allocation8], %s691
        // Predicated region
        $region45: #{tpu_custom_call.1} parent=31 // pred_check
          %p693 = pneg %p133
        $region46: #{tpu_custom_call.1} parent=31 // pred_check_branch
          %695 = sbr.rel (%p693) target = $region48
        $region47: #{tpu_custom_call.1} parent=31 // pred_region
          %s696 = smul.u32 8, %s28
          %s698 = ssub.s32 3072, 3072
          %699 = vsyncadd %s689, %s698
          %s700 = smul.addr %s696, 3
          %s701 = smul.addr %s27, 48
          %s702 = sadd.s32 %s700, %s701
          %s703 = smul.addr %s702, 128
          %s704 = scalar_lea.hbm %s3, %s703
          %s705 = sshll.u32 %s692, 4
          %s706 = int_to_ptr.vmem [resolvable:$true] %s705
          %711 = dma.vmem_to_hbm [thread:$0]  %s706, 3072, %s704, %s689, 128, 128, 8
        $region48: #{tpu_custom_call.1} parent=31 // pred_fallthru
          _
      $region32: #{tpu_custom_call.1} parent=5 // pred_fallthru
        _
      %p712 = scmp.le.s32.totalorder 2, %s18
      // Predicated region
      $region49: #{tpu_custom_call.1} parent=5 // pred_check
        %p713 = pneg %p712
      $region50: #{tpu_custom_call.1} parent=5 // pred_check_branch
        %715 = sbr.rel (%p713) target = $region52
      $region51: #{tpu_custom_call.1} parent=5 // pred_region
        %s716 = ssub.s32 %s18, 2
        // Predicated region
        $region53: #{tpu_custom_call.1} parent=51 // pred_check
          %p717 = pneg %p139
        $region54: #{tpu_custom_call.1} parent=51 // pred_check_branch
          %719 = sbr.rel (%p717) target = $region56
        $region55: #{tpu_custom_call.1} parent=51 // pred_region
          %s720 = sand.u32 %s124, 1
          %s721 = scalar_lea.sflag [#allocation4], %s720
          %s722 = sand.u32 %s124, 1
          %s723 = smul.addr %s722, 192
          %s724 = scalar_lea.vmem [#allocation8], %s723
          %725 = dma.done %s721, 3072
        $region56: #{tpu_custom_call.1} parent=51 // pred_fallthru
          _
      $region52: #{tpu_custom_call.1} parent=5 // pred_fallthru
        _
    $region6: #{tpu_custom_call.1} parent=1 // loop_footer
      %s22 = sadd.s32 1, %s18
    $region7: #{tpu_custom_call.1} parent=1 // loop_footer_branch
      %17 = sbr.rel target = $region3
    $region8: #{tpu_custom_call.1} parent=1 // loop_exit
      _
    %726 = vsyncpa [#allocation3], 1
    %s727 = scalar_lea.sflag [#allocation3], 1
    %728 = vsyncpa %s727, 1
    %729 = vsyncpa [#allocation6], 1
    %s730 = scalar_lea.sflag [#allocation6], 1
    %731 = vsyncpa %s730, 1
    %732 = vsyncpa [#allocation4], 1
    %s733 = scalar_lea.sflag [#allocation4], 1
    %734 = vsyncpa %s733, 1

</llo_original>
